<compile_context>
chip_gen: v7x
topology: tpu7x:2x2x1
jax: 0.10.0
libtpu: 0.0.40
codegen_flags: <defaults>
</compile_context>

<pallas_src>
from functools import partial

import jax
import jax.numpy as jnp
from jax.experimental import pallas as pl
from jax.experimental.pallas import tpu as pltpu


_LANE = 128
_MiB = 1024 * 1024


def _round_up(x, m):
    return -(-x // m) * m


def _round_down(x, m):
    return (x // m) * m


def _vmem_capacity_bytes():
    try:
        return int(pltpu.get_tpu_info().vmem_capacity_bytes)
    except Exception:
        return 64 * _MiB  # conservative fallback (v7x per-TensorCore)


def _detect_v5e():
    try:
        kind = jax.devices()[0].device_kind.lower()
        return ("v5 lite" in kind) or ("v5e" in kind) or ("v5litepod" in kind)
    except Exception:
        return False


_VMEM_CAP = max(_vmem_capacity_bytes(), 64 * _MiB)
# Leave Mosaic internal-scratch headroom; cap the scoped limit at 100 MiB so
# v5e/v6e (128 MiB) keep slack and v7x (64 MiB) stays inside physical VMEM.
_VMEM_LIMIT = int(min(_VMEM_CAP - 8 * _MiB, 100 * _MiB))
_STREAM_BUDGET = int(_VMEM_LIMIT * 0.7)
_IS_V5E = _detect_v5e()


def _sublane_pack(itemsize):
    return max(8, 32 // itemsize)


def _choose_spatial_tile(S, rows, itemsize, n_live, budget):
    """Largest lane tile (multiple of 128, or S itself) such that n_live
    (rows, TS) blocks fit in `budget` bytes."""
    per_block = max(1, budget // n_live)
    max_lanes = max(1, per_block // (rows * itemsize))
    if S <= max_lanes:
        return S  # single full-extent tile (no 128-multiple constraint)
    ts = max(_LANE, _round_down(max_lanes, _LANE))
    return min(ts, _round_up(S, _LANE))


def _clamp_row_tile(tr, itemsize, n_live, budget, pack):
    """Shrink a row tile so a (tr, 128) block still fits the per-block budget."""
    per_block = max(1, budget // n_live)
    if tr * _LANE * itemsize <= per_block or tr <= pack:
        return tr
    return max(pack, _round_down(per_block // (_LANE * itemsize), pack))


def _apply_compute_dtype(dtype):
    if jnp.dtype(dtype) == jnp.dtype(jnp.bfloat16) and not _IS_V5E:
        return jnp.bfloat16  # bf16-native VPU on v6e/v7x
    return jnp.float32


# --------------------------------------------------------------------------
# Phase 1: per-row pooling of diff = x1 - x2 over the spatial (lane) axis.
#   stats[:, 0] = sum(diff), stats[:, 1] = max(diff), stats[:, 2] = min(diff)
# --------------------------------------------------------------------------
def _pool_kernel(x1_ref, x2_ref, st_ref, sum_sc, max_sc, min_sc, *,
                 S, TS, need_mask):
    s_idx = pl.program_id(1)
    n_s = pl.num_programs(1)
    diff = x1_ref[...].astype(jnp.float32) - x2_ref[...].astype(jnp.float32)

    @pl.when(s_idx == 0)
    def _():
        sum_sc[...] = jnp.zeros_like(sum_sc)
        max_sc[...] = jnp.full_like(max_sc, -jnp.inf)
        min_sc[...] = jnp.full_like(min_sc, jnp.inf)

    def accumulate(d_sum, d_max, d_min):
        sum_sc[...] = sum_sc[...] + jnp.sum(d_sum, axis=-1, keepdims=True)
        max_sc[...] = jnp.maximum(max_sc[...],
                                  jnp.max(d_max, axis=-1, keepdims=True))
        min_sc[...] = jnp.minimum(min_sc[...],
                                  jnp.min(d_min, axis=-1, keepdims=True))

    if need_mask:
        is_last = s_idx == n_s - 1

        @pl.when(is_last)
        def _():
            lane = jax.lax.broadcasted_iota(jnp.int32, diff.shape, 1)
            valid = (s_idx * TS + lane) < S
            accumulate(jnp.where(valid, diff, 0.0),
                       jnp.where(valid, diff, -jnp.inf),
                       jnp.where(valid, diff, jnp.inf))

        @pl.when(jnp.logical_not(is_last))
        def _():
            accumulate(diff, diff, diff)
    else:
        accumulate(diff, diff, diff)

    @pl.when(s_idx == n_s - 1)
    def _():
        st_ref[...] = jnp.concatenate(
            [sum_sc[...], max_sc[...], min_sc[...]], axis=-1)


# --------------------------------------------------------------------------
# Phase 2: F_1 = w12 * fuse + x1 ; F_2 = w21 * fuse + x2  (streaming)
# --------------------------------------------------------------------------
def _apply_kernel(g_ref, fuse_ref, x1_ref, x2_ref, f1_ref, f2_ref, *,
                  compute_dtype):
    fuse = fuse_ref[...].astype(compute_dtype)
    w12 = g_ref[:, 0:1]                           # (TR, 1), already compute_dtype
    w21 = g_ref[:, 1:2]
    f1_ref[...] = (w12 * fuse + x1_ref[...].astype(compute_dtype)).astype(f1_ref.dtype)
    f2_ref[...] = (w21 * fuse + x2_ref[...].astype(compute_dtype)).astype(f2_ref.dtype)


@partial(jax.jit, static_argnames=("spatial_tile", "row_tile"))
def differential_enhance(fuse, x1, x2, w_fc1, w_fc2, *,
                         spatial_tile=None, row_tile=None):
    b, c, d, h, w = x1.shape
    S = d * h * w
    R = b * c
    dtype = x1.dtype
    itemsize = jnp.dtype(dtype).itemsize
    pack = _sublane_pack(itemsize)

    # Free reshapes (contiguous): (b, c) -> rows, spatial dims -> lane axis.
    fuse_f = fuse.reshape(R, S)
    x1_f = x1.reshape(R, S)
    x2_f = x2.reshape(R, S)

    # ---------------- pooling pass ----------------
    n_live_pool = 5  # 2 streamed inputs, double-buffered, + slack
    if R >= 2 * pack:
        tr_p = _round_up(-(-R // 2), pack)  # 2-way row split (megacore on v7x)
    else:
        tr_p = R
    tr_p = _clamp_row_tile(tr_p, itemsize, n_live_pool, _STREAM_BUDGET, pack)
    ts_p = spatial_tile if spatial_tile is not None else _choose_spatial_tile(
        S, tr_p, itemsize, n_live_pool, _STREAM_BUDGET)
    n_rp = pl.cdiv(R, tr_p)
    n_sp = pl.cdiv(S, ts_p)
    mask_p = (S % ts_p) != 0

    x_spec_p = pl.BlockSpec((tr_p, ts_p), lambda r, s: (r, s))
    stats = pl.pallas_call(
        partial(_pool_kernel, S=S, TS=ts_p, need_mask=mask_p),
        out_shape=jax.ShapeDtypeStruct((R, 3), jnp.float32),
        grid_spec=pltpu.PrefetchScalarGridSpec(
            num_scalar_prefetch=0,
            grid=(n_rp, n_sp),
            in_specs=[x_spec_p, x_spec_p],
            out_specs=pl.BlockSpec((tr_p, 3), lambda r, s: (r, 0)),
            scratch_shapes=[pltpu.VMEM((tr_p, 1), jnp.float32)] * 3,
        ),
        compiler_params=pltpu.CompilerParams(
            dimension_semantics=("parallel", "arbitrary"),
            vmem_limit_bytes=_VMEM_LIMIT),
        cost_estimate=pl.CostEstimate(
            flops=4 * R * S, transcendentals=0,
            bytes_accessed=2 * R * S * itemsize),
    )(x1_f, x2_f)

    # ---------------- tiny MLP (fc1 -> relu -> fc2 -> sigmoid) ----------------
    stats = stats.reshape(b, c, 3)
    avg_d = stats[..., 0] / jnp.float32(S)
    max_d = stats[..., 1]
    min_d = stats[..., 2]
    v12 = avg_d + max_d            # avgpool(x1-x2) + maxpool(x1-x2)
    v21 = -avg_d - min_d           # avgpool(x2-x1) + maxpool(x2-x1)

    w1t = w_fc1.astype(jnp.float32).T   # (c, c//4)
    w2t = w_fc2.astype(jnp.float32).T   # (c//4, c)

    def mlp(v):
        return jax.nn.sigmoid(jnp.maximum(v @ w1t, 0.0) @ w2t)

    compute_dtype = _apply_compute_dtype(dtype)
    gates = jnp.stack([mlp(v12), mlp(v21)], axis=-1)        # (b, c, 2) f32
    gates = gates.reshape(R, 2).astype(compute_dtype)

    # ---------------- apply pass ----------------
    n_live_apply = 11  # 3 inputs + 2 outputs, double-buffered, + slack
    if row_tile is not None:
        tr_a = row_tile
    else:
        tr_a = _clamp_row_tile(R, itemsize, n_live_apply, _STREAM_BUDGET, pack)
    ts_a = spatial_tile if spatial_tile is not None else _choose_spatial_tile(
        S, tr_a, itemsize, n_live_apply, _STREAM_BUDGET)
    n_ra = pl.cdiv(R, tr_a)
    n_sa = pl.cdiv(S, ts_a)

    x_spec_a = pl.BlockSpec((tr_a, ts_a), lambda r, s: (r, s))
    g_spec = pl.BlockSpec((tr_a, 2), lambda r, s: (r, 0))
    f1, f2 = pl.pallas_call(
        partial(_apply_kernel, compute_dtype=compute_dtype),
        out_shape=(jax.ShapeDtypeStruct((R, S), dtype),
                   jax.ShapeDtypeStruct((R, S), dtype)),
        grid_spec=pltpu.PrefetchScalarGridSpec(
            num_scalar_prefetch=0,
            grid=(n_ra, n_sa),
            in_specs=[g_spec, x_spec_a, x_spec_a, x_spec_a],
            out_specs=[x_spec_a, x_spec_a],
        ),
        compiler_params=pltpu.CompilerParams(
            dimension_semantics=("parallel", "parallel"),
            vmem_limit_bytes=_VMEM_LIMIT),
        cost_estimate=pl.CostEstimate(
            flops=4 * R * S, transcendentals=0,
            bytes_accessed=5 * R * S * itemsize),
    )(gates, fuse_f, x1_f, x2_f)

    return f1.reshape(b, c, d, h, w), f2.reshape(b, c, d, h, w)


# --------------------------------------------------------------------------
# Pure-JAX reference (mirrors the PyTorch forward, computed in f32).
# --------------------------------------------------------------------------
def _reference(fuse, x1, x2, w_fc1, w_fc2):
    f32 = jnp.float32
    fuse32, x132, x232 = (a.astype(f32) for a in (fuse, x1, x2))
    b, c = x1.shape[:2]
    diff = x132 - x232
    avg12 = jnp.mean(diff, axis=(2, 3, 4))
    max12 = jnp.max(diff, axis=(2, 3, 4))
    avg21 = -avg12
    max21 = jnp.max(-diff, axis=(2, 3, 4))

    def mlp(v):
        return jax.nn.sigmoid(jax.nn.relu(v @ w_fc1.T) @ w_fc2.T)

    w12 = mlp(avg12 + max12).reshape(b, c, 1, 1, 1)
    w21 = mlp(avg21 + max21).reshape(b, c, 1, 1, 1)
    return w12 * fuse32 + x132, w21 * fuse32 + x232


def _run_case(nf, b, dims, dtype, spatial_tile, row_tile, rtol, atol):
    key = jax.random.PRNGKey(0)
    k1, k2, k3, k4, k5 = jax.random.split(key, 5)
    d, h, w = dims
    shape = (b, nf, d, h, w)
    fuse = jax.random.normal(k1, shape, dtype=jnp.float32).astype(dtype)
    x1 = jax.random.normal(k2, shape, dtype=jnp.float32).astype(dtype)
    x2 = jax.random.normal(k3, shape, dtype=jnp.float32).astype(dtype)
    # PyTorch nn.Linear weight layout: (out_features, in_features), no bias.
    w_fc1 = 0.1 * jax.random.normal(k4, (nf // 4, nf), dtype=jnp.float32)
    w_fc2 = 0.1 * jax.random.normal(k5, (nf, nf // 4), dtype=jnp.float32)

    f1, f2 = differential_enhance(fuse, x1, x2, w_fc1, w_fc2,
                                  spatial_tile=spatial_tile, row_tile=row_tile)
    jax.block_until_ready((f1, f2))
    assert f1.dtype == dtype and f2.dtype == dtype, "output dtype mismatch"

    r1, r2 = _reference(fuse, x1, x2, w_fc1, w_fc2)
    assert jnp.allclose(f1.astype(jnp.float32), r1, rtol=rtol, atol=atol), \
        f"F_1 mismatch (nf={nf}, dims={dims}, dtype={dtype})"
    assert jnp.allclose(f2.astype(jnp.float32), r2, rtol=rtol, atol=atol), \
        f"F_2 mismatch (nf={nf}, dims={dims}, dtype={dtype})"


if __name__ == "__main__":
    # 1) small f32, default tiling (S=256 single tile, pool rows split 2-way)
    _run_case(nf=8, b=2, dims=(4, 8, 8), dtype=jnp.float32,
              spatial_tile=None, row_tile=None, rtol=1e-5, atol=1e-5)
    # 2) f32, forced spatial + row tiling (S=384, TS=128, apply rows 2 tiles)
    _run_case(nf=8, b=2, dims=(4, 8, 12), dtype=jnp.float32,
              spatial_tile=128, row_tile=8, rtol=1e-5, atol=1e-5)
    # 3) f32, ragged S (S=210, TS=128 -> masked tail tile)
    _run_case(nf=8, b=1, dims=(3, 7, 10), dtype=jnp.float32,
              spatial_tile=128, row_tile=None, rtol=1e-5, atol=1e-5)
    # 4) bf16 streaming (native bf16 apply math on v6e/v7x, f32 on v5e)
    _run_case(nf=16, b=2, dims=(4, 8, 8), dtype=jnp.bfloat16,
              spatial_tile=None, row_tile=None, rtol=2e-2, atol=2e-2)

    print("KERNEL_OK")
</pallas_src>

<mosaic_0001>
module attributes {stable_mosaic.version = 11 : i64} {
  func.func @_pool_kernel(%arg0: i32, %arg1: i32, %arg2: memref<8x256xf32, #tpu.memory_space<vmem>>, %arg3: memref<8x256xf32, #tpu.memory_space<vmem>>, %arg4: memref<8x3xf32, #tpu.memory_space<vmem>>, %arg5: memref<8x1xf32, #tpu.memory_space<vmem>>, %arg6: memref<8x1xf32, #tpu.memory_space<vmem>>, %arg7: memref<8x1xf32, #tpu.memory_space<vmem>>) attributes {dimension_semantics = [#tpu.dimension_semantics<parallel>, #tpu.dimension_semantics<arbitrary>], iteration_bounds = array<i64: 2, 1>, scalar_prefetch = 0 : i64, scratch_operands = 3 : i64, tpu.core_type = #tpu.core_type<tc>, window_params = [{transform_indices = @transform_0, window_bounds = array<i64: 8, 256>}, {transform_indices = @transform_1, window_bounds = array<i64: 8, 256>}, {transform_indices = @transform_2, window_bounds = array<i64: 8, 3>}]} {
    %c0 = arith.constant 0 : index
    %c0_0 = arith.constant 0 : index
    %0 = vector.load %arg2[%c0, %c0_0] : memref<8x256xf32, #tpu.memory_space<vmem>>, vector<8x256xf32>
    %c0_1 = arith.constant 0 : index
    %c0_2 = arith.constant 0 : index
    %1 = vector.load %arg3[%c0_1, %c0_2] : memref<8x256xf32, #tpu.memory_space<vmem>>, vector<8x256xf32>
    %2 = arith.subf %0, %1 : vector<8x256xf32>
    %c0_i32 = arith.constant 0 : i32
    %3 = arith.cmpi eq, %arg1, %c0_i32 : i32
    %4 = arith.extui %3 : i1 to i32
    %c0_i32_3 = arith.constant 0 : i32
    %5 = arith.cmpi ne, %4, %c0_i32_3 : i32
    scf.if %5 {
      %cst_20 = arith.constant 0.000000e+00 : f32
      %24 = vector.broadcast %cst_20 : f32 to vector<8x1xf32>
      %c0_21 = arith.constant 0 : index
      %c0_22 = arith.constant 0 : index
      %25 = vector.load %arg5[%c0_21, %c0_22] : memref<8x1xf32, #tpu.memory_space<vmem>>, vector<8x1xf32>
      tpu.vector_store %arg5[%c0_21, %c0_22], %24 {strides = array<i32>} : memref<8x1xf32, #tpu.memory_space<vmem>>, vector<8x1xf32>,
      %cst_23 = arith.constant 0xFF800000 : f32
      %26 = vector.broadcast %cst_23 : f32 to vector<8x1xf32>
      %c0_24 = arith.constant 0 : index
      %c0_25 = arith.constant 0 : index
      %27 = vector.load %arg6[%c0_24, %c0_25] : memref<8x1xf32, #tpu.memory_space<vmem>>, vector<8x1xf32>
      tpu.vector_store %arg6[%c0_24, %c0_25], %26 {strides = array<i32>} : memref<8x1xf32, #tpu.memory_space<vmem>>, vector<8x1xf32>,
      %cst_26 = arith.constant 0x7F800000 : f32
      %28 = vector.broadcast %cst_26 : f32 to vector<8x1xf32>
      %c0_27 = arith.constant 0 : index
      %c0_28 = arith.constant 0 : index
      %29 = vector.load %arg7[%c0_27, %c0_28] : memref<8x1xf32, #tpu.memory_space<vmem>>, vector<8x1xf32>
      tpu.vector_store %arg7[%c0_27, %c0_28], %28 {strides = array<i32>} : memref<8x1xf32, #tpu.memory_space<vmem>>, vector<8x1xf32>,
    } else {
    }
    %c0_4 = arith.constant 0 : index
    %c0_5 = arith.constant 0 : index
    %6 = vector.load %arg5[%c0_4, %c0_5] : memref<8x1xf32, #tpu.memory_space<vmem>>, vector<8x1xf32>
    %cst = arith.constant dense<0.000000e+00> : vector<8xf32>
    %7 = vector.multi_reduction <add>, %2, %cst [1] : vector<8x256xf32> to vector<8xf32>
    %8 = vector.shape_cast %7 : vector<8xf32> to vector<8x1xf32>
    %9 = arith.addf %6, %8 : vector<8x1xf32>
    %c0_6 = arith.constant 0 : index
    %c0_7 = arith.constant 0 : index
    %10 = vector.load %arg5[%c0_6, %c0_7] : memref<8x1xf32, #tpu.memory_space<vmem>>, vector<8x1xf32>
    tpu.vector_store %arg5[%c0_6, %c0_7], %9 {strides = array<i32>} : memref<8x1xf32, #tpu.memory_space<vmem>>, vector<8x1xf32>,
    %c0_8 = arith.constant 0 : index
    %c0_9 = arith.constant 0 : index
    %11 = vector.load %arg6[%c0_8, %c0_9] : memref<8x1xf32, #tpu.memory_space<vmem>>, vector<8x1xf32>
    %cst_10 = arith.constant dense<0xFF800000> : vector<8xf32>
    %12 = vector.multi_reduction <maximumf>, %2, %cst_10 [1] : vector<8x256xf32> to vector<8xf32>
    %13 = vector.shape_cast %12 : vector<8xf32> to vector<8x1xf32>
    %14 = arith.maximumf %11, %13 : vector<8x1xf32>
    %c0_11 = arith.constant 0 : index
    %c0_12 = arith.constant 0 : index
    %15 = vector.load %arg6[%c0_11, %c0_12] : memref<8x1xf32, #tpu.memory_space<vmem>>, vector<8x1xf32>
    tpu.vector_store %arg6[%c0_11, %c0_12], %14 {strides = array<i32>} : memref<8x1xf32, #tpu.memory_space<vmem>>, vector<8x1xf32>,
    %c0_13 = arith.constant 0 : index
    %c0_14 = arith.constant 0 : index
    %16 = vector.load %arg7[%c0_13, %c0_14] : memref<8x1xf32, #tpu.memory_space<vmem>>, vector<8x1xf32>
    %cst_15 = arith.constant dense<0x7F800000> : vector<8xf32>
    %17 = vector.multi_reduction <minimumf>, %2, %cst_15 [1] : vector<8x256xf32> to vector<8xf32>
    %18 = vector.shape_cast %17 : vector<8xf32> to vector<8x1xf32>
    %19 = arith.minimumf %16, %18 : vector<8x1xf32>
    %c0_16 = arith.constant 0 : index
    %c0_17 = arith.constant 0 : index
    %20 = vector.load %arg7[%c0_16, %c0_17] : memref<8x1xf32, #tpu.memory_space<vmem>>, vector<8x1xf32>
    tpu.vector_store %arg7[%c0_16, %c0_17], %19 {strides = array<i32>} : memref<8x1xf32, #tpu.memory_space<vmem>>, vector<8x1xf32>,
    %c0_i32_18 = arith.constant 0 : i32
    %21 = arith.cmpi eq, %arg1, %c0_i32_18 : i32
    %22 = arith.extui %21 : i1 to i32
    %c0_i32_19 = arith.constant 0 : i32
    %23 = arith.cmpi ne, %22, %c0_i32_19 : i32
    scf.if %23 {
      %c0_20 = arith.constant 0 : index
      %c0_21 = arith.constant 0 : index
      %24 = vector.load %arg5[%c0_20, %c0_21] : memref<8x1xf32, #tpu.memory_space<vmem>>, vector<8x1xf32>
      %c0_22 = arith.constant 0 : index
      %c0_23 = arith.constant 0 : index
      %25 = vector.load %arg6[%c0_22, %c0_23] : memref<8x1xf32, #tpu.memory_space<vmem>>, vector<8x1xf32>
      %c0_24 = arith.constant 0 : index
      %c0_25 = arith.constant 0 : index
      %26 = vector.load %arg7[%c0_24, %c0_25] : memref<8x1xf32, #tpu.memory_space<vmem>>, vector<8x1xf32>
      %27 = tpu.concatenate %24, %25, %26 in 1 : vector<8x1xf32>, vector<8x1xf32>, vector<8x1xf32> -> vector<8x3xf32>
      %c0_26 = arith.constant 0 : index
      %c0_27 = arith.constant 0 : index
      %28 = vector.load %arg4[%c0_26, %c0_27] : memref<8x3xf32, #tpu.memory_space<vmem>>, vector<8x3xf32>
      tpu.vector_store %arg4[%c0_26, %c0_27], %27 {strides = array<i32>} : memref<8x3xf32, #tpu.memory_space<vmem>>, vector<8x3xf32>,
    } else {
    }
    return
  }
  func.func @transform_0(%arg0: i32, %arg1: i32) -> (i32, i32) {
    %c0_i32 = arith.constant 0 : i32
    return %arg0, %arg1 : i32, i32
  }
  func.func @transform_1(%arg0: i32, %arg1: i32) -> (i32, i32) {
    %c0_i32 = arith.constant 0 : i32
    return %arg0, %arg1 : i32, i32
  }
  func.func @transform_2(%arg0: i32, %arg1: i32) -> (i32, i32) {
    %c0_i32 = arith.constant 0 : i32
    %c0_i32_0 = arith.constant 0 : i32
    return %arg0, %c0_i32 : i32, i32
  }
}

module attributes {stable_mosaic.version = 11 : i64} {
  func.func @_apply_kernel(%arg0: i32, %arg1: i32, %arg2: memref<16x2xf32, #tpu.memory_space<vmem>>, %arg3: memref<16x256xf32, #tpu.memory_space<vmem>>, %arg4: memref<16x256xf32, #tpu.memory_space<vmem>>, %arg5: memref<16x256xf32, #tpu.memory_space<vmem>>, %arg6: memref<16x256xf32, #tpu.memory_space<vmem>>, %arg7: memref<16x256xf32, #tpu.memory_space<vmem>>) attributes {dimension_semantics = [#tpu.dimension_semantics<parallel>, #tpu.dimension_semantics<parallel>], iteration_bounds = array<i64: 1, 1>, scalar_prefetch = 0 : i64, scratch_operands = 0 : i64, tpu.core_type = #tpu.core_type<tc>, window_params = [{transform_indices = @transform_0, window_bounds = array<i64: 16, 2>}, {transform_indices = @transform_1, window_bounds = array<i64: 16, 256>}, {transform_indices = @transform_2, window_bounds = array<i64: 16, 256>}, {transform_indices = @transform_3, window_bounds = array<i64: 16, 256>}, {transform_indices = @transform_4, window_bounds = array<i64: 16, 256>}, {transform_indices = @transform_5, window_bounds = array<i64: 16, 256>}]} {
    %c0 = arith.constant 0 : index
    %c0_0 = arith.constant 0 : index
    %0 = vector.load %arg3[%c0, %c0_0] : memref<16x256xf32, #tpu.memory_space<vmem>>, vector<16x256xf32>
    %c0_1 = arith.constant 0 : index
    %c0_2 = arith.constant 0 : index
    %1 = vector.load %arg2[%c0_1, %c0_2] : memref<16x2xf32, #tpu.memory_space<vmem>>, vector<16x1xf32>
    %c0_3 = arith.constant 0 : index
    %c1 = arith.constant 1 : index
    %2 = vector.load %arg2[%c0_3, %c1] : memref<16x2xf32, #tpu.memory_space<vmem>>, vector<16x1xf32>
    %3 = vector.broadcast %1 : vector<16x1xf32> to vector<16x256xf32>
    %4 = arith.mulf %3, %0 : vector<16x256xf32>
    %c0_4 = arith.constant 0 : index
    %c0_5 = arith.constant 0 : index
    %5 = vector.load %arg4[%c0_4, %c0_5] : memref<16x256xf32, #tpu.memory_space<vmem>>, vector<16x256xf32>
    %6 = arith.addf %4, %5 : vector<16x256xf32>
    %c0_6 = arith.constant 0 : index
    %c0_7 = arith.constant 0 : index
    %7 = vector.load %arg6[%c0_6, %c0_7] : memref<16x256xf32, #tpu.memory_space<vmem>>, vector<16x256xf32>
    tpu.vector_store %arg6[%c0_6, %c0_7], %6 {strides = array<i32>} : memref<16x256xf32, #tpu.memory_space<vmem>>, vector<16x256xf32>,
    %8 = vector.broadcast %2 : vector<16x1xf32> to vector<16x256xf32>
    %9 = arith.mulf %8, %0 : vector<16x256xf32>
    %c0_8 = arith.constant 0 : index
    %c0_9 = arith.constant 0 : index
    %10 = vector.load %arg5[%c0_8, %c0_9] : memref<16x256xf32, #tpu.memory_space<vmem>>, vector<16x256xf32>
    %11 = arith.addf %9, %10 : vector<16x256xf32>
    %c0_10 = arith.constant 0 : index
    %c0_11 = arith.constant 0 : index
    %12 = vector.load %arg7[%c0_10, %c0_11] : memref<16x256xf32, #tpu.memory_space<vmem>>, vector<16x256xf32>
    tpu.vector_store %arg7[%c0_10, %c0_11], %11 {strides = array<i32>} : memref<16x256xf32, #tpu.memory_space<vmem>>, vector<16x256xf32>,
    return
  }
  func.func @transform_0(%arg0: i32, %arg1: i32) -> (i32, i32) {
    %c0_i32 = arith.constant 0 : i32
    %c0_i32_0 = arith.constant 0 : i32
    return %arg0, %c0_i32 : i32, i32
  }
  func.func @transform_1(%arg0: i32, %arg1: i32) -> (i32, i32) {
    %c0_i32 = arith.constant 0 : i32
    return %arg0, %arg1 : i32, i32
  }
  func.func @transform_2(%arg0: i32, %arg1: i32) -> (i32, i32) {
    %c0_i32 = arith.constant 0 : i32
    return %arg0, %arg1 : i32, i32
  }
  func.func @transform_3(%arg0: i32, %arg1: i32) -> (i32, i32) {
    %c0_i32 = arith.constant 0 : i32
    return %arg0, %arg1 : i32, i32
  }
  func.func @transform_4(%arg0: i32, %arg1: i32) -> (i32, i32) {
    %c0_i32 = arith.constant 0 : i32
    return %arg0, %arg1 : i32, i32
  }
  func.func @transform_5(%arg0: i32, %arg1: i32) -> (i32, i32) {
    %c0_i32 = arith.constant 0 : i32
    return %arg0, %arg1 : i32, i32
  }
}

</mosaic_0001>

<llo_original>
// kernel: differential_enhance.2
$region0: #{differential_enhance.2}
  #allocation0 [shape = 'u32[]', space=smem, size = 0x4, offset = 0x4, fixed_abs, tag = 'smem constant byte address 0x4 - core index']
  #allocation1 [shape = 'u32[144,128]{1,0:T(1,128)}', space=vmem, size = 0x12000, scoped, tag = 'internal scratch']
  #allocation2 [shape = 'f32[8,1]{1,0:T(8,128)}', space=vmem, size = 0x1000, scoped, tag = 'scratch operand']
  #allocation3 [shape = 'f32[8,1]{1,0:T(8,128)}', space=vmem, size = 0x1000, scoped, tag = 'scratch operand']
  #allocation4 [shape = 'f32[8,1]{1,0:T(8,128)}', space=vmem, size = 0x1000, scoped, tag = 'scratch operand']
  %s0 = inlined_call_operand.vmem [shape: f32[16,256], index: 0, kind: input, shape index: {}]
  %s1 = inlined_call_operand.vmem [shape: f32[16,256], index: 1, kind: input, shape index: {}]
  %s2 = inlined_call_operand.vmem [shape: f32[16,3], index: 2, kind: output, shape index: {}]
  %s3 = sld [smem:[#allocation0]]
  $region49: #{differential_enhance.2} parent=0
    _
  %s5 = ssub.s32 1, %s3
  %s6 = scalar_select 0, %s5, %s3
  loop: start=0, step=1, limit=4
  $region2: #{differential_enhance.2} parent=0 // loop_pre_header
    _
  $region3: #{differential_enhance.2} parent=0 // loop_header
    %s8 = sphi 0, %s12
    %p9 = scmp.ge.s32.totalorder %s8, 4
    %s15 = sphi 0, %s27
    %s16 = sphi 0, %s23
    %s17 = sphi 0, %s15
    %s18 = sphi 0, %s16
    %s19 = sphi 0, %s17
    %s20 = sphi 0, %s18
    %s32 = sphi 0, %s34
    %s35 = sphi 0, %s32
    %s36 = sphi 0, %s35
    %s52 = sphi 0, %s36
    %s60 = sphi 0, %s62
    %s63 = sphi 0, %s60
    %s64 = sphi 0, %s63
    %s80 = sphi 0, %s64
    %s86 = sphi 0, %s88
    %s89 = sphi 0, %s86
    %s90 = sphi 0, %s89
    %s106 = sphi 0, %s90
  $region4: #{differential_enhance.2} parent=0 // loop_header_branch
    %11 = sbr.rel (%p9) target = $region8
  $region5: #{differential_enhance.2} parent=0 // loop_body
    %s13 = ssub.s32 %s8, 1
    %s14 = ssub.s32 %s8, 2
    %s21 = sadd.s32 1, %s16
    %p22 = scmp.ge.s32.totalorder %s21, 1
    %s23 = scalar_select %p22, 0, %s21
    %s24 = sadd.s32 1, %s15
    %s25 = scalar_select %p22, %s24, %s15
    %p26 = scmp.ge.s32.totalorder %s25, 2
    %s27 = scalar_select %p26, 0, %s25
    %s28 = ssub.s32 %s15, %s27
    %s29 = ssub.s32 %s16, %s23
    %s30 = sor.u32 %s28, %s29
    %p31 = scmp.eq.s32.totalorder %s30, 0
    %s33 = sadd.s32 %s32, 1
    %s34 = scalar_select %p31, %s32, %s33
    %p37 = pneg %p31
    %p38 = scmp.eq.s32.totalorder %s8, 1
    %p39 = por %p37, %p38
    %p40 = scmp.ne.s32.totalorder %s32, %s35
    %p41 = scmp.eq.s32.totalorder %s8, 0
    %p42 = por %p40, %p41
    %p43 = scmp.ne.s32.totalorder %s32, %s35
    %p44 = scmp.eq.s32.totalorder %s13, 1
    %p45 = por %p43, %p44
    %p46 = scmp.ne.s32.totalorder %s35, %s36
    %p47 = scmp.eq.s32.totalorder %s13, 0
    %p48 = por %p46, %p47
    %p49 = scmp.ne.s32.totalorder %s35, %s36
    %p50 = scmp.eq.s32.totalorder %s14, 1
    %p51 = por %p49, %p50
    %p53 = scmp.ne.s32.totalorder %s36, %s52
    %p54 = scmp.eq.s32.totalorder %s14, 0
    %p55 = por %p53, %p54
    %s56 = ssub.s32 %s15, %s27
    %s57 = ssub.s32 %s16, %s23
    %s58 = sor.u32 %s56, %s57
    %p59 = scmp.eq.s32.totalorder %s58, 0
    %s61 = sadd.s32 %s60, 1
    %s62 = scalar_select %p59, %s60, %s61
    %p65 = pneg %p59
    %p66 = scmp.eq.s32.totalorder %s8, 1
    %p67 = por %p65, %p66
    %p68 = scmp.ne.s32.totalorder %s60, %s63
    %p69 = scmp.eq.s32.totalorder %s8, 0
    %p70 = por %p68, %p69
    %p71 = scmp.ne.s32.totalorder %s60, %s63
    %p72 = scmp.eq.s32.totalorder %s13, 1
    %p73 = por %p71, %p72
    %p74 = scmp.ne.s32.totalorder %s63, %s64
    %p75 = scmp.eq.s32.totalorder %s13, 0
    %p76 = por %p74, %p75
    %p77 = scmp.ne.s32.totalorder %s63, %s64
    %p78 = scmp.eq.s32.totalorder %s14, 1
    %p79 = por %p77, %p78
    %p81 = scmp.ne.s32.totalorder %s64, %s80
    %p82 = scmp.eq.s32.totalorder %s14, 0
    %p83 = por %p81, %p82
    %s84 = ssub.s32 %s15, %s27
    %p85 = scmp.eq.s32.totalorder %s84, 0
    %s87 = sadd.s32 %s86, 1
    %s88 = scalar_select %p85, %s86, %s87
    %p91 = pneg %p85
    %p92 = scmp.eq.s32.totalorder %s8, 1
    %p93 = por %p91, %p92
    %p94 = scmp.ne.s32.totalorder %s86, %s89
    %p95 = scmp.eq.s32.totalorder %s8, 0
    %p96 = por %p94, %p95
    %p97 = scmp.ne.s32.totalorder %s86, %s89
    %p98 = scmp.eq.s32.totalorder %s13, 1
    %p99 = por %p97, %p98
    %p100 = scmp.ne.s32.totalorder %s89, %s90
    %p101 = scmp.eq.s32.totalorder %s13, 0
    %p102 = por %p100, %p101
    %p103 = scmp.ne.s32.totalorder %s89, %s90
    %p104 = scmp.eq.s32.totalorder %s14, 1
    %p105 = por %p103, %p104
    %p107 = scmp.ne.s32.totalorder %s90, %s106
    %p108 = scmp.eq.s32.totalorder %s14, 0
    %p109 = por %p107, %p108
    %p110 = scmp.le.s32.totalorder 1, %s8
    %p111 = scmp.lt.s32.totalorder %s8, 3
    %p112 = pnand %p110, %p111
    %p113 = pneg %p112
    // Predicated region
    $region9: #{differential_enhance.2} parent=5 // pred_check
      _
    $region10: #{differential_enhance.2} parent=5 // pred_check_branch
      %115 = sbr.rel (%p112) target = $region12
    $region11: #{differential_enhance.2} parent=5 // pred_region
      %s116 = ssub.s32 %s8, 1
    $region12: #{differential_enhance.2} parent=5 // pred_fallthru
      _
    %p117 = scmp.lt.s32.totalorder %s8, 2
    // Predicated region
    $region13: #{differential_enhance.2} parent=5 // pred_check
      %p118 = pneg %p117
    $region14: #{differential_enhance.2} parent=5 // pred_check_branch
      %120 = sbr.rel (%p118) target = $region16
    $region15: #{differential_enhance.2} parent=5 // pred_region
      // Predicated region
      $region17: #{differential_enhance.2} parent=15 // pred_check
        %p121 = pneg %p42
      $region18: #{differential_enhance.2} parent=15 // pred_check_branch
        %123 = sbr.rel (%p121) target = $region20
      $region19: #{differential_enhance.2} parent=15 // pred_region
        %s124 = smul.u32 2, %s16
        %p125 = scmp.lt.s32.totalorder %s15, 1
        %s126 = scalar_select %p125, %s15, 1
        %p127 = scmp.lt.s32.totalorder %s124, 1
        %s128 = scalar_select %p127, %s124, 1
        %s129 = smul.addr %s126, 2
        %s130 = sadd.s32 %s128, %s129
        %s131 = smul.addr %s130, 8
        %s132 = scalar_lea.vmem %s0, %s131
        %s133 = smul.u32 2, %s16
      $region20: #{differential_enhance.2} parent=15 // pred_fallthru
        _
      // Predicated region
      $region21: #{differential_enhance.2} parent=15 // pred_check
        %p134 = pneg %p70
      $region22: #{differential_enhance.2} parent=15 // pred_check_branch
        %136 = sbr.rel (%p134) target = $region24
      $region23: #{differential_enhance.2} parent=15 // pred_region
        %s137 = smul.u32 2, %s16
        %p138 = scmp.lt.s32.totalorder %s15, 1
        %s139 = scalar_select %p138, %s15, 1
        %p140 = scmp.lt.s32.totalorder %s137, 1
        %s141 = scalar_select %p140, %s137, 1
        %s142 = smul.addr %s139, 2
        %s143 = sadd.s32 %s141, %s142
        %s144 = smul.addr %s143, 8
        %s145 = scalar_lea.vmem %s1, %s144
        %s146 = smul.u32 2, %s16
      $region24: #{differential_enhance.2} parent=15 // pred_fallthru
        _
    $region16: #{differential_enhance.2} parent=5 // pred_fallthru
      _
    %p147 = scmp.le.s32.totalorder 1, %s8
    %p148 = scmp.lt.s32.totalorder %s8, 3
    %p149 = pnand %p147, %p148
    %p150 = pneg %p149
    // Predicated region
    $region25: #{differential_enhance.2} parent=5 // pred_check
      _
    $region26: #{differential_enhance.2} parent=5 // pred_check_branch
      %152 = sbr.rel (%p149) target = $region28
    $region27: #{differential_enhance.2} parent=5 // pred_region
      %s153 = ssub.s32 %s8, 1
      %s154 = smul.u32 2, %s18
      %p155 = scmp.lt.s32.totalorder %s17, 1
      %s156 = scalar_select %p155, %s17, 1
      %p157 = scmp.lt.s32.totalorder %s154, 1
      %s158 = scalar_select %p157, %s154, 1
      %s159 = smul.addr %s156, 2
      %s160 = sadd.s32 %s158, %s159
      %s161 = smul.addr %s160, 8
      %s162 = scalar_lea.vmem %s0, %s161
      %p163 = pneg %p48
      %p164 = pneg %p45
      %s165 = smul.u32 2, %s18
      %p166 = scmp.lt.s32.totalorder %s17, 1
      %s167 = scalar_select %p166, %s17, 1
      %p168 = scmp.lt.s32.totalorder %s165, 1
      %s169 = scalar_select %p168, %s165, 1
      %s170 = smul.addr %s167, 2
      %s171 = sadd.s32 %s169, %s170
      %s172 = smul.addr %s171, 8
      %s173 = scalar_lea.vmem %s1, %s172
      %p174 = pneg %p76
      %p175 = pneg %p73
      %p176 = pneg %p102
      %p177 = pneg %p99
      %p178 = scmp.lt.s32.totalorder %s17, 1
      %s179 = scalar_select %p178, %s17, 1
      %s180 = smul.addr %s179, 8
      %s181 = scalar_lea.vmem %s2, %s180
      %s182 = smul.u32 2, %s18
      %p183 = scmp.lt.s32.totalorder %s17, 1
      %s184 = scalar_select %p183, %s17, 1
      %p185 = scmp.lt.s32.totalorder %s182, 1
      %s186 = scalar_select %p185, %s182, 1
      %s187 = smul.addr %s184, 2
      %s188 = sadd.s32 %s186, %s187
      %s189 = smul.addr %s188, 8
      %s190 = scalar_lea.vmem %s0, %s189
      %s191 = smul.u32 2, %s18
      %s192 = smul.u32 2, %s18
      %p193 = scmp.lt.s32.totalorder %s17, 1
      %s194 = scalar_select %p193, %s17, 1
      %p195 = scmp.lt.s32.totalorder %s192, 1
      %s196 = scalar_select %p195, %s192, 1
      %s197 = smul.addr %s194, 2
      %s198 = sadd.s32 %s196, %s197
      %s199 = smul.addr %s198, 8
      %s200 = scalar_lea.vmem %s1, %s199
      %s201 = smul.u32 2, %s18
      %p202 = scmp.lt.s32.totalorder %s17, 1
      %s203 = scalar_select %p202, %s17, 1
      %s204 = smul.addr %s203, 8
      %s205 = scalar_lea.vmem %s2, %s204
      %v206 = vld [vmem:[%s190] sm:$0xff]
      %v207 = vld [vmem:[%s190 + $0x8] sm:$0xff]
      %v208 = vld [vmem:[%s200] sm:$0xff]
      %v209 = vld [vmem:[%s200 + $0x8] sm:$0xff]
      %v210 = vsub.f32 %v206, %v208
      %v211 = vsub.f32 %v207, %v209
      %p212 = scmp.eq.s32.totalorder %s18, 0
      // Predicated region
      $region29: #{differential_enhance.2} parent=27 // pred_check
        %p213 = pneg %p212
      $region30: #{differential_enhance.2} parent=27 // pred_check_branch
        %215 = sbr.rel (%p213) target = $region32
      $region31: #{differential_enhance.2} parent=27 // pred_region
        %vm216 = vcmask 7168
        %217 = vst.msk [vmem:[#allocation2] sm:$0xff] %vm216, 0.0
        %218 = vst.msk [vmem:[#allocation3] sm:$0xff] %vm216, -inf
        %219 = vst.msk [vmem:[#allocation4] sm:$0xff] %vm216, inf
      $region32: #{differential_enhance.2} parent=27 // pred_fallthru
        _
      %v220 = vld [vmem:[#allocation2] sm:$0xff]
      %v221 = vadd.f32 %v210, %v211
      %222 = vadd.xlane.f32.xlu0 %v221
      %v223 = vpop.xlane.xlu0 %222
      %v224 = vadd.f32 %v220, %v223
      %vm225 = vcmask 7168
      %226 = vst.msk [vmem:[#allocation2] sm:$0xff] %vm225, %v224
      %v227 = vld [vmem:[#allocation3] sm:$0xff]
      %v228 = vmax.f32 %v210, %v211
      %229 = vmax.xlane.f32.xlu0 %v228
      %v230 = vpop.xlane.xlu0 %229
      %v231 = vmax.f32 %v227, %v230
      %232 = vst.msk [vmem:[#allocation3] sm:$0xff] %vm225, %v231
      %v233 = vld [vmem:[#allocation4] sm:$0xff]
      %v234 = vmin.f32 %v210, %v211
      %235 = vmin.xlane.f32.xlu0 %v234
      %v236 = vpop.xlane.xlu0 %235
      %v237 = vmin.f32 %v233, %v236
      %238 = vst.msk [vmem:[#allocation4] sm:$0xff] %vm225, %v237
      // Predicated region
      $region33: #{differential_enhance.2} parent=27 // pred_check
        %p239 = pneg %p212
      $region34: #{differential_enhance.2} parent=27 // pred_check_branch
        %241 = sbr.rel (%p239) target = $region36
      $region35: #{differential_enhance.2} parent=27 // pred_region
        %v242 = vld [vmem:[#allocation2] sm:$0xff]
        %v243 = vld [vmem:[#allocation3] sm:$0xff]
        %v244 = vld [vmem:[#allocation4] sm:$0xff]
        %246 = vrot.lane.b32.xlu0 %v243, 1
        %v247 = vpop.permute.xlu0 %246
        %250 = vrot.lane.b32.xlu0 %v244, 2
        %v251 = vpop.permute.xlu0 %250
        %v253 = vsel %vm225, %v242, %v247
        %vm254 = vcmask 15360
        %v255 = vsel %vm254, %v253, %v251
        %vm256 = vcmask 23552
        %257 = vst.msk [vmem:[%s205] sm:$0xff] %vm256, %v255
      $region36: #{differential_enhance.2} parent=27 // pred_fallthru
        _
      %p258 = scmp.lt.s32.totalorder %s17, 1
      %s259 = scalar_select %p258, %s17, 1
      %s260 = smul.addr %s259, 8
      %s261 = scalar_lea.vmem %s2, %s260
      // Predicated region
      $region37: #{differential_enhance.2} parent=27 // pred_check
        %p262 = pneg %p99
      $region38: #{differential_enhance.2} parent=27 // pred_check_branch
        %264 = sbr.rel (%p262) target = $region40
      $region39: #{differential_enhance.2} parent=27 // pred_region
        _
      $region40: #{differential_enhance.2} parent=27 // pred_fallthru
        _
    $region28: #{differential_enhance.2} parent=5 // pred_fallthru
      _
    %p265 = scmp.le.s32.totalorder 2, %s8
    // Predicated region
    $region41: #{differential_enhance.2} parent=5 // pred_check
      %p266 = pneg %p265
    $region42: #{differential_enhance.2} parent=5 // pred_check_branch
      %268 = sbr.rel (%p266) target = $region44
    $region43: #{differential_enhance.2} parent=5 // pred_region
      %s269 = ssub.s32 %s8, 2
      // Predicated region
      $region45: #{differential_enhance.2} parent=43 // pred_check
        %p270 = pneg %p105
      $region46: #{differential_enhance.2} parent=43 // pred_check_branch
        %272 = sbr.rel (%p270) target = $region48
      $region47: #{differential_enhance.2} parent=43 // pred_region
        %p273 = scmp.lt.s32.totalorder %s19, 1
        %s274 = scalar_select %p273, %s19, 1
        %s275 = smul.addr %s274, 8
        %s276 = scalar_lea.vmem %s2, %s275
      $region48: #{differential_enhance.2} parent=43 // pred_fallthru
        _
    $region44: #{differential_enhance.2} parent=5 // pred_fallthru
      _
  $region6: #{differential_enhance.2} parent=0 // loop_footer
    %s12 = sadd.s32 1, %s8
  $region7: #{differential_enhance.2} parent=0 // loop_footer_branch
    %7 = sbr.rel target = $region3
  $region8: #{differential_enhance.2} parent=0 // loop_exit
    _

// kernel: differential_enhance.3
$region0: #{differential_enhance.3}
  #allocation0 [shape = 'u32[]', space=smem, size = 0x4, offset = 0x4, fixed_abs, tag = 'smem constant byte address 0x4 - core index']
  #allocation1 [shape = 'u32[144,128]{1,0:T(1,128)}', space=vmem, size = 0x12000, scoped, tag = 'internal scratch']
  %s0 = inlined_call_operand.vmem [shape: f32[16,2], index: 0, kind: input, shape index: {}]
  %s1 = inlined_call_operand.vmem [shape: f32[16,256], index: 1, kind: input, shape index: {}]
  %s2 = inlined_call_operand.vmem [shape: f32[16,256], index: 2, kind: input, shape index: {}]
  %s3 = inlined_call_operand.vmem [shape: f32[16,256], index: 3, kind: input, shape index: {}]
  %s4 = inlined_call_operand.vmem [shape: f32[16,256], index: 4, kind: output, shape index: {0}]
  %s5 = inlined_call_operand.vmem [shape: f32[16,256], index: 5, kind: output, shape index: {1}]
  %6 = xla_tuple %s4, %s5
  %s7 = sld [smem:[#allocation0]]
  $region34: #{differential_enhance.3} parent=0
    _
  %s9 = ssub.s32 1, %s7
  %s10 = scalar_select 0, %s9, %s7
  // Predicated region
  $region2: #{differential_enhance.3} parent=0 // pred_check
    _
  $region3: #{differential_enhance.3} parent=0 // pred_check_branch
    %12 = sbr.rel (0) target = $region5
  $region4: #{differential_enhance.3} parent=0 // pred_region
    _
  $region5: #{differential_enhance.3} parent=0 // pred_fallthru
    _
  // Predicated region
  $region6: #{differential_enhance.3} parent=0 // pred_check
    _
  $region7: #{differential_enhance.3} parent=0 // pred_check_branch
    %14 = sbr.rel (0) target = $region9
  $region8: #{differential_enhance.3} parent=0 // pred_region
    _
  $region9: #{differential_enhance.3} parent=0 // pred_fallthru
    _
  // Predicated region
  $region10: #{differential_enhance.3} parent=0 // pred_check
    _
  $region11: #{differential_enhance.3} parent=0 // pred_check_branch
    %16 = sbr.rel (0) target = $region13
  $region12: #{differential_enhance.3} parent=0 // pred_region
    _
  $region13: #{differential_enhance.3} parent=0 // pred_fallthru
    _
  // Predicated region
  $region14: #{differential_enhance.3} parent=0 // pred_check
    _
  $region15: #{differential_enhance.3} parent=0 // pred_check_branch
    %18 = sbr.rel (0) target = $region17
  $region16: #{differential_enhance.3} parent=0 // pred_region
    _
  $region17: #{differential_enhance.3} parent=0 // pred_fallthru
    _
  %v19 = vld [vmem:[%s1] sm:$0xff]
  %v20 = vld [vmem:[%s1 + $0x8] sm:$0xff]
  %v21 = vld [vmem:[%s1 + $0x10] sm:$0xff]
  %v22 = vld [vmem:[%s1 + $0x18] sm:$0xff]
  %v23 = vld [vmem:[%s0] sm:$0xff]
  %v24 = vld [vmem:[%s0 + $0x8] sm:$0xff]
  %26 = vset.pattern.permute.xlu0 0
  %27 = vperm.xlu0 %26, %v23
  %v28 = vpop.permute.xlu0 %27
  %31 = vset.pattern.permute.xlu0 0
  %32 = vperm.xlu0 %31, %v24
  %v33 = vpop.permute.xlu0 %32
  %v35 = vmul.f32 %v28, %v19
  %v36 = vmul.f32 %v28, %v20
  %v37 = vmul.f32 %v33, %v21
  %v38 = vmul.f32 %v33, %v22
  %v39 = vld [vmem:[%s2] sm:$0xff]
  %v40 = vld [vmem:[%s2 + $0x8] sm:$0xff]
  %v41 = vld [vmem:[%s2 + $0x10] sm:$0xff]
  %v42 = vld [vmem:[%s2 + $0x18] sm:$0xff]
  %v43 = vadd.f32 %v35, %v39
  %v44 = vadd.f32 %v36, %v40
  %v45 = vadd.f32 %v37, %v41
  %v46 = vadd.f32 %v38, %v42
  %47 = vst [vmem:[%s4] sm:$0xff] %v43
  %48 = vst [vmem:[%s4 + $0x8] sm:$0xff] %v44
  %49 = vst [vmem:[%s4 + $0x10] sm:$0xff] %v45
  %50 = vst [vmem:[%s4 + $0x18] sm:$0xff] %v46
  %51 = vset.pattern.permute.xlu0 1
  %52 = vperm.xlu0 %51, %v23
  %v53 = vpop.permute.xlu0 %52
  %55 = vset.pattern.permute.xlu0 1
  %56 = vperm.xlu0 %55, %v24
  %v57 = vpop.permute.xlu0 %56
  %v59 = vmul.f32 %v53, %v19
  %v60 = vmul.f32 %v53, %v20
  %v61 = vmul.f32 %v57, %v21
  %v62 = vmul.f32 %v57, %v22
  %v63 = vld [vmem:[%s3] sm:$0xff]
  %v64 = vld [vmem:[%s3 + $0x8] sm:$0xff]
  %v65 = vld [vmem:[%s3 + $0x10] sm:$0xff]
  %v66 = vld [vmem:[%s3 + $0x18] sm:$0xff]
  %v67 = vadd.f32 %v59, %v63
  %v68 = vadd.f32 %v60, %v64
  %v69 = vadd.f32 %v61, %v65
  %v70 = vadd.f32 %v62, %v66
  %71 = vst [vmem:[%s5] sm:$0xff] %v67
  %72 = vst [vmem:[%s5 + $0x8] sm:$0xff] %v68
  %73 = vst [vmem:[%s5 + $0x10] sm:$0xff] %v69
  %74 = vst [vmem:[%s5 + $0x18] sm:$0xff] %v70
  // Predicated region
  $region18: #{differential_enhance.3} parent=0 // pred_check
    _
  $region19: #{differential_enhance.3} parent=0 // pred_check_branch
    %76 = sbr.rel (0) target = $region21
  $region20: #{differential_enhance.3} parent=0 // pred_region
    _
  $region21: #{differential_enhance.3} parent=0 // pred_fallthru
    _
  // Predicated region
  $region22: #{differential_enhance.3} parent=0 // pred_check
    _
  $region23: #{differential_enhance.3} parent=0 // pred_check_branch
    %78 = sbr.rel (0) target = $region25
  $region24: #{differential_enhance.3} parent=0 // pred_region
    _
  $region25: #{differential_enhance.3} parent=0 // pred_fallthru
    _
  // Predicated region
  $region26: #{differential_enhance.3} parent=0 // pred_check
    _
  $region27: #{differential_enhance.3} parent=0 // pred_check_branch
    %80 = sbr.rel (0) target = $region29
  $region28: #{differential_enhance.3} parent=0 // pred_region
    _
  $region29: #{differential_enhance.3} parent=0 // pred_fallthru
    _
  // Predicated region
  $region30: #{differential_enhance.3} parent=0 // pred_check
    _
  $region31: #{differential_enhance.3} parent=0 // pred_check_branch
    %82 = sbr.rel (0) target = $region33
  $region32: #{differential_enhance.3} parent=0 // pred_region
    _
  $region33: #{differential_enhance.3} parent=0 // pred_fallthru
    _

</llo_original>
